<compile_context>
chip_gen: v7x
topology: tpu7x:2x2x1
jax: 0.10.0
libtpu: 0.0.40
codegen_flags: <defaults>
</compile_context>

<pallas_src>
import jax
import jax.numpy as jnp
from jax.experimental import pallas as pl
from jax.experimental.pallas import tpu as pltpu


# --------------------------------------------------------------------------------------
# Kernels
# --------------------------------------------------------------------------------------
def _cheb_layer_kernel(x_i_ref, xs_ref, a_ref, dc_ref, dg_ref,
                       w0_ref, w1_ref, b1_ref, wg_ref,
                       hws_ref, acc_ref):
    """Row tile i: accumulate A @ x_scaled over k; at k==last fuse the whole layer-1 epilogue
       h = ReLU(x@W0 - dc*(acc@W1) + b1) and emit hw_scaled = dg * (h @ Wg) for layer 2."""
    i = pl.program_id(0)
    k = pl.program_id(1)
    tm, tk = a_ref.shape

    @pl.when(k == 0)
    def _init():
        acc_ref[...] = jnp.zeros_like(acc_ref)

    # Raw bf16 A-tile matmul against the pre-scaled, VMEM-resident x (no per-element VPU work).
    ks = pl.multiple_of(k * tk, tk)
    acc_ref[...] += jnp.dot(a_ref[...], xs_ref[pl.ds(ks, tk), :],
                            preferred_element_type=jnp.float32)

    @pl.when(k == pl.num_programs(1) - 1)
    def _finalize():
        rs = pl.multiple_of(i * tm, tm)
        dc = dc_ref[pl.ds(rs, tm), :]            # (tm,1) Cheb row scale D_c^{-1/2}
        dg = dg_ref[pl.ds(rs, tm), :]            # (tm,1) GCN  row scale D_g^{-1/2}
        xw0 = jnp.dot(x_i_ref[...], w0_ref[...], preferred_element_type=jnp.float32)
        sxw1 = jnp.dot(acc_ref[...].astype(jnp.bfloat16), w1_ref[...],
                       preferred_element_type=jnp.float32)
        # ChebConv 'sym', lambda_max=2:  T0 x = x,  T1 x = S x,  S = -D^{-1/2} A D^{-1/2};
        # the row scale is applied once here instead of per A element in the k-loop.
        h = jnp.maximum(xw0 - dc * sxw1 + b1_ref[...], 0.0)     # ReLU
        # TODO(synk): training-mode dropout (pltpu.prng_random_bits mask) not emitted; eval mode.
        hw = jnp.dot(h.astype(jnp.bfloat16), wg_ref[...], preferred_element_type=jnp.float32)
        # Pre-scale for layer 2's contraction: hw_scaled = D_g^{-1/2} (h @ Wg).
        hws_ref[...] = (dg * hw).astype(hws_ref.dtype)


def _gcn_layer_kernel(hws_ref, a_ref, dg_ref, bg_ref, o_ref, acc_ref):
    """Row tile i: accumulate A @ hw_scaled over k; at k==last apply the row scale, the exact
       self-loop term (dg^2 * hw = dg * hw_scaled) and the bias."""
    i = pl.program_id(0)
    k = pl.program_id(1)
    tm, tk = a_ref.shape

    @pl.when(k == 0)
    def _init():
        acc_ref[...] = jnp.zeros_like(acc_ref)

    ks = pl.multiple_of(k * tk, tk)
    acc_ref[...] += jnp.dot(a_ref[...], hws_ref[pl.ds(ks, tk), :],
                            preferred_element_type=jnp.float32)

    @pl.when(k == pl.num_programs(1) - 1)
    def _finalize():
        rs = pl.multiple_of(i * tm, tm)
        dg = dg_ref[pl.ds(rs, tm), :]
        hws_i = hws_ref[pl.ds(rs, tm), :].astype(jnp.float32)
        # A_hat = D~^{-1/2}(A+I)D~^{-1/2}:  dg*(A@hw_scaled)  +  dg*hw_scaled (self-loop).
        o_ref[...] = dg * (acc_ref[...] + hws_i) + bg_ref[...]


# --------------------------------------------------------------------------------------
# Wrapper
# --------------------------------------------------------------------------------------
def _round_up(v, m):
    return ((v + m - 1) // m) * m


def enhanced_gcn_encoder(x, edge_index, params):
    """x: [N, C_in] float32 node features, edge_index: [2, E] int32 (src, dst)."""
    N, c_in = x.shape
    w0, w1, b1, wg, bg = (params["w0"], params["w1"], params["b1"],
                          params["wg"], params["bg"])
    hidden = w0.shape[1]
    c_out = wg.shape[1]

    # ---- padding / tiling ---------------------------------------------------------
    cin_pad = _round_up(c_in, 128)
    h_pad = _round_up(hidden, 128)
    cout_pad = _round_up(c_out, 128)
    n128 = _round_up(N, 128)
    # Prefer large tiles (amortize ~0.35us/grid-step); round n_pad up to the tile so awkward
    # N never falls back to tiny tiles.  1024^2 bf16 A tiles double-buffered = 4 MiB.
    if n128 >= 1024:
        tile = 1024
    elif n128 >= 512:
        tile = 512
    else:
        tile = n128
    tm = tk = tile
    n_pad = _round_up(n128, tile)
    grid = (n_pad // tm, n_pad // tk)

    # ---- graph operands (O(E) degrees; A scattered straight into bf16) -------------
    src, dst = edge_index[0], edge_index[1]
    # A[dst, src] += 1 (duplicate edges accumulate, matching message-passing semantics).
    a_bf16 = (jnp.zeros((n_pad, n_pad), jnp.bfloat16)
              .at[dst, src].add(jnp.ones(src.shape, jnp.bfloat16)))
    # TODO(synk): on v7x, store/stream A as fp8 e4m3 (0/1 exactly representable) to halve the
    # dominant HBM stream; kept bf16 here so the same kernel is optimal on v5e/v6e too.
    # TODO(synk): for genuinely sparse / huge graphs, replace the dense A with CSR/block-sparse
    # tiles + scalar-prefetched block offsets so only nonzero blocks are DMA'd.
    deg = jax.ops.segment_sum(jnp.ones(src.shape, jnp.float32), dst, num_segments=n_pad)
    dinv_c = jnp.where(deg > 0, 1.0 / jnp.sqrt(deg), 0.0)       # Cheb 'sym' (no self-loops)
    dinv_g = 1.0 / jnp.sqrt(deg + 1.0)                           # GCN (with self-loops)

    x_f32 = jnp.pad(x, ((0, n_pad - N), (0, cin_pad - c_in)))
    x_p = x_f32.astype(jnp.bfloat16)                             # T0 operand (x @ W0)
    xs_p = (dinv_c[:, None] * x_f32).astype(jnp.bfloat16)        # pre-scaled contraction operand
    dc_col = dinv_c[:, None].astype(jnp.float32)                 # (n_pad, 1)
    dg_col = dinv_g[:, None].astype(jnp.float32)                 # (n_pad, 1)

    # bf16 resident weights (native MXU dtype); biases stay f32.
    w0_p = jnp.pad(w0, ((0, cin_pad - c_in), (0, h_pad - hidden))).astype(jnp.bfloat16)
    w1_p = jnp.pad(w1, ((0, cin_pad - c_in), (0, h_pad - hidden))).astype(jnp.bfloat16)
    b1_p = jnp.pad(b1.reshape(1, -1), ((0, 0), (0, h_pad - hidden))).astype(jnp.float32)
    wg_p = jnp.pad(wg, ((0, h_pad - hidden), (0, cout_pad - c_out))).astype(jnp.bfloat16)
    bg_p = jnp.pad(bg.reshape(1, -1), ((0, 0), (0, cout_pad - c_out))).astype(jnp.float32)

    cparams = pltpu.CompilerParams(
        dimension_semantics=("parallel", "arbitrary"),
        # 48 MiB: plenty for 1024-tiles + resident x/hw, still inside v7x's 64 MiB physical VMEM.
        vmem_limit_bytes=48 * 1024 * 1024,
    )

    def resident(shape):
        return pl.BlockSpec(shape, lambda i, k: (0, 0))

    # ---------------- layer 1: hw_scaled = dg * (ReLU(x@W0 + (S@x)@W1 + b1) @ Wg) ----------
    hws = pl.pallas_call(
        _cheb_layer_kernel,
        out_shape=jax.ShapeDtypeStruct((n_pad, cout_pad), jnp.bfloat16),
        grid_spec=pltpu.PrefetchScalarGridSpec(
            num_scalar_prefetch=0,
            grid=grid,
            in_specs=[
                pl.BlockSpec((tm, cin_pad), lambda i, k: (i, 0)),   # x row tile (T0 term)
                resident((n_pad, cin_pad)),                          # x_scaled, VMEM-resident
                pl.BlockSpec((tm, tk), lambda i, k: (i, k)),         # A tile (bf16 stream)
                resident((n_pad, 1)),                                # dinv_c (row scale)
                resident((n_pad, 1)),                                # dinv_g (for hw_scaled)
                resident((cin_pad, h_pad)),                          # W0 (bf16, resident)
                resident((cin_pad, h_pad)),                          # W1 (bf16, resident)
                resident((1, h_pad)),                                # b1
                resident((h_pad, cout_pad)),                         # Wg (bf16, resident)
            ],
            out_specs=pl.BlockSpec((tm, cout_pad), lambda i, k: (i, 0)),
            scratch_shapes=[pltpu.VMEM((tm, cin_pad), jnp.float32)],
        ),
        compiler_params=cparams,
    )(x_p, xs_p, a_bf16, dc_col, dg_col, w0_p, w1_p, b1_p, wg_p)

    # ---------------- layer 2: out = A_hat @ (h @ Wg) + bg ----------------
    out = pl.pallas_call(
        _gcn_layer_kernel,
        out_shape=jax.ShapeDtypeStruct((n_pad, cout_pad), jnp.float32),
        grid_spec=pltpu.PrefetchScalarGridSpec(
            num_scalar_prefetch=0,
            grid=grid,
            in_specs=[
                resident((n_pad, cout_pad)),                         # hw_scaled, VMEM-resident
                pl.BlockSpec((tm, tk), lambda i, k: (i, k)),         # A tile (bf16 stream)
                resident((n_pad, 1)),                                # dinv_g (row scale)
                resident((1, cout_pad)),                             # bg
            ],
            out_specs=pl.BlockSpec((tm, cout_pad), lambda i, k: (i, 0)),
            scratch_shapes=[pltpu.VMEM((tm, cout_pad), jnp.float32)],
        ),
        compiler_params=cparams,
    )(hws, a_bf16, dg_col, bg_p)

    # Padded rows are garbage by construction (their adjacency columns are zero, so they never
    # contaminate valid rows) and are sliced off here.
    return out[:N, :c_out]


# --------------------------------------------------------------------------------------
# Plain-JAX (f32) reference for correctness check
# --------------------------------------------------------------------------------------
def _reference(x, edge_index, params):
    N = x.shape[0]
    src, dst = edge_index[0], edge_index[1]
    A = jnp.zeros((N, N), jnp.float32).at[dst, src].add(1.0)
    deg = jax.ops.segment_sum(jnp.ones(src.shape, jnp.float32), dst, num_segments=N)
    dinv_c = jnp.where(deg > 0, 1.0 / jnp.sqrt(deg), 0.0)
    S = -(dinv_c[:, None] * A * dinv_c[None, :])
    dinv_g = 1.0 / jnp.sqrt(deg + 1.0)
    A_hat = dinv_g[:, None] * (A + jnp.eye(N, dtype=jnp.float32)) * dinv_g[None, :]

    h = x @ params["w0"] + (S @ x) @ params["w1"] + params["b1"]
    h = jnp.maximum(h, 0.0)
    return A_hat @ (h @ params["wg"]) + params["bg"]


if __name__ == "__main__":
    # Small shapes consistent with the module: N=16 nodes, in=4, hidden=32, out=8.
    # NOTE: at these toy shapes the kernel is launch/padding-bound; the tiled/bf16 design
    # targets real graph sizes (N in the thousands+).
    N, C_IN, HIDDEN, C_OUT = 16, 4, 32, 8

    key = jax.random.PRNGKey(0)
    k_x, k_w0, k_w1, k_wg = jax.random.split(key, 4)

    x = jax.random.normal(k_x, (N, C_IN), dtype=jnp.float32)

    # Deterministic graph: undirected ring plus chords (no self-loops, no duplicate edges).
    srcs, dsts = [], []
    for i in range(N):
        for j in (i + 1, i + 5):
            j = j % N
            srcs += [i, j]
            dsts += [j, i]
    edge_index = jnp.array([srcs, dsts], dtype=jnp.int32)

    def glorot(k, shape):
        fan_in, fan_out = shape
        lim = (6.0 / (fan_in + fan_out)) ** 0.5
        return jax.random.uniform(k, shape, jnp.float32, -lim, lim)

    params = {
        "w0": glorot(k_w0, (C_IN, HIDDEN)),      # ChebConv Theta_0
        "w1": glorot(k_w1, (C_IN, HIDDEN)),      # ChebConv Theta_1
        "b1": jnp.zeros((1, HIDDEN), jnp.float32),
        "wg": glorot(k_wg, (HIDDEN, C_OUT)),     # GCNConv weight
        "bg": jnp.zeros((1, C_OUT), jnp.float32),
    }

    out = enhanced_gcn_encoder(x, edge_index, params)
    out = jax.block_until_ready(out)

    ref = _reference(x, edge_index, params)
    assert out.shape == (N, C_OUT)
    # bf16 matmul operands (A, x, weights, hw round-trip) with f32 accumulation ->
    # compare against the f32 reference at bf16 tolerance.
    assert jnp.allclose(out, ref, atol=3e-2, rtol=3e-2), "mismatch vs reference"

    print("KERNEL_OK")
</pallas_src>

<mosaic_0001>
module attributes {stable_mosaic.version = 11 : i64} {
  func.func @_cheb_layer_kernel(%arg0: i32, %arg1: i32, %arg2: memref<128x128xbf16, #tpu.memory_space<vmem>>, %arg3: memref<128x128xbf16, #tpu.memory_space<vmem>>, %arg4: memref<128x128xbf16, #tpu.memory_space<vmem>>, %arg5: memref<128x1xf32, #tpu.memory_space<vmem>>, %arg6: memref<128x1xf32, #tpu.memory_space<vmem>>, %arg7: memref<128x128xbf16, #tpu.memory_space<vmem>>, %arg8: memref<128x128xbf16, #tpu.memory_space<vmem>>, %arg9: memref<1x128xf32, #tpu.memory_space<vmem>>, %arg10: memref<128x128xbf16, #tpu.memory_space<vmem>>, %arg11: memref<128x128xbf16, #tpu.memory_space<vmem>>, %arg12: memref<128x128xf32, #tpu.memory_space<vmem>>) attributes {dimension_semantics = [#tpu.dimension_semantics<parallel>, #tpu.dimension_semantics<arbitrary>], iteration_bounds = array<i64: 1, 1>, scalar_prefetch = 0 : i64, scratch_operands = 1 : i64, tpu.core_type = #tpu.core_type<tc>, window_params = [{transform_indices = @transform_0, window_bounds = array<i64: 128, 128>}, {pipeline_mode = #tpu.pipeline_mode<synchronous>, transform_indices = @transform_1, window_bounds = array<i64: 128, 128>}, {transform_indices = @transform_2, window_bounds = array<i64: 128, 128>}, {pipeline_mode = #tpu.pipeline_mode<synchronous>, transform_indices = @transform_3, window_bounds = array<i64: 128, 1>}, {pipeline_mode = #tpu.pipeline_mode<synchronous>, transform_indices = @transform_4, window_bounds = array<i64: 128, 1>}, {pipeline_mode = #tpu.pipeline_mode<synchronous>, transform_indices = @transform_5, window_bounds = array<i64: 128, 128>}, {pipeline_mode = #tpu.pipeline_mode<synchronous>, transform_indices = @transform_6, window_bounds = array<i64: 128, 128>}, {pipeline_mode = #tpu.pipeline_mode<synchronous>, transform_indices = @transform_7, window_bounds = array<i64: 1, 128>}, {pipeline_mode = #tpu.pipeline_mode<synchronous>, transform_indices = @transform_8, window_bounds = array<i64: 128, 128>}, {transform_indices = @transform_9, window_bounds = array<i64: 128, 128>}]} {
    %c0_i32 = arith.constant 0 : i32
    %0 = arith.cmpi eq, %arg1, %c0_i32 : i32
    %1 = arith.extui %0 : i1 to i32
    %c0_i32_0 = arith.constant 0 : i32
    %2 = arith.cmpi ne, %1, %c0_i32_0 : i32
    scf.if %2 {
      %cst_9 = arith.constant 0.000000e+00 : f32
      %15 = vector.broadcast %cst_9 : f32 to vector<128x128xf32>
      %c0_10 = arith.constant 0 : index
      %c0_11 = arith.constant 0 : index
      %16 = vector.load %arg12[%c0_10, %c0_11] : memref<128x128xf32, #tpu.memory_space<vmem>>, vector<128x128xf32>
      tpu.vector_store %arg12[%c0_10, %c0_11], %15 {strides = array<i32>} : memref<128x128xf32, #tpu.memory_space<vmem>>, vector<128x128xf32>,
    } else {
    }
    %c128_i32 = arith.constant 128 : i32
    %3 = arith.muli %arg1, %c128_i32 : i32
    %4 = tpu.assume_multiple %3, 128 : i32
    %c0 = arith.constant 0 : index
    %c0_1 = arith.constant 0 : index
    %5 = vector.load %arg12[%c0, %c0_1] : memref<128x128xf32, #tpu.memory_space<vmem>>, vector<128x128xf32>
    %c0_2 = arith.constant 0 : index
    %c0_3 = arith.constant 0 : index
    %6 = vector.load %arg4[%c0_2, %c0_3] : memref<128x128xbf16, #tpu.memory_space<vmem>>, vector<128x128xbf16>
    %7 = arith.index_cast %4 : i32 to index
    %c0_4 = arith.constant 0 : index
    %8 = vector.load %arg3[%7, %c0_4] : memref<128x128xbf16, #tpu.memory_space<vmem>>, vector<128x128xbf16>
    %cst = arith.constant dense<0.000000e+00> : vector<128x128xf32>
    %9 = tpu.matmul %6, %8, %cst {dimension_numbers = #tpu.dot_dimension_numbers<[1], [0], [0], [1], [0, 0, 1, 1], [], []>} : vector<128x128xbf16>, vector<128x128xbf16>, vector<128x128xf32> -> vector<128x128xf32>
    %10 = arith.addf %5, %9 : vector<128x128xf32>
    %c0_5 = arith.constant 0 : index
    %c0_6 = arith.constant 0 : index
    %11 = vector.load %arg12[%c0_5, %c0_6] : memref<128x128xf32, #tpu.memory_space<vmem>>, vector<128x128xf32>
    tpu.vector_store %arg12[%c0_5, %c0_6], %10 {strides = array<i32>} : memref<128x128xf32, #tpu.memory_space<vmem>>, vector<128x128xf32>,
    %c0_i32_7 = arith.constant 0 : i32
    %12 = arith.cmpi eq, %arg1, %c0_i32_7 : i32
    %13 = arith.extui %12 : i1 to i32
    %c0_i32_8 = arith.constant 0 : i32
    %14 = arith.cmpi ne, %13, %c0_i32_8 : i32
    scf.if %14 {
      %c128_i32_9 = arith.constant 128 : i32
      %15 = arith.muli %arg0, %c128_i32_9 : i32
      %16 = tpu.assume_multiple %15, 128 : i32
      %17 = arith.index_cast %16 : i32 to index
      %c0_10 = arith.constant 0 : index
      %18 = vector.load %arg5[%17, %c0_10] : memref<128x1xf32, #tpu.memory_space<vmem>>, vector<128x1xf32>
      %19 = arith.index_cast %16 : i32 to index
      %c0_11 = arith.constant 0 : index
      %20 = vector.load %arg6[%19, %c0_11] : memref<128x1xf32, #tpu.memory_space<vmem>>, vector<128x1xf32>
      %c0_12 = arith.constant 0 : index
      %c0_13 = arith.constant 0 : index
      %21 = vector.load %arg2[%c0_12, %c0_13] : memref<128x128xbf16, #tpu.memory_space<vmem>>, vector<128x128xbf16>
      %c0_14 = arith.constant 0 : index
      %c0_15 = arith.constant 0 : index
      %22 = vector.load %arg7[%c0_14, %c0_15] : memref<128x128xbf16, #tpu.memory_space<vmem>>, vector<128x128xbf16>
      %cst_16 = arith.constant dense<0.000000e+00> : vector<128x128xf32>
      %23 = tpu.matmul %21, %22, %cst_16 {dimension_numbers = #tpu.dot_dimension_numbers<[1], [0], [0], [1], [0, 0, 1, 1], [], []>} : vector<128x128xbf16>, vector<128x128xbf16>, vector<128x128xf32> -> vector<128x128xf32>
      %c0_17 = arith.constant 0 : index
      %c0_18 = arith.constant 0 : index
      %24 = vector.load %arg12[%c0_17, %c0_18] : memref<128x128xf32, #tpu.memory_space<vmem>>, vector<128x128xf32>
      %25 = arith.truncf %24 : vector<128x128xf32> to vector<128x128xbf16>
      %c0_19 = arith.constant 0 : index
      %c0_20 = arith.constant 0 : index
      %26 = vector.load %arg8[%c0_19, %c0_20] : memref<128x128xbf16, #tpu.memory_space<vmem>>, vector<128x128xbf16>
      %cst_21 = arith.constant dense<0.000000e+00> : vector<128x128xf32>
      %27 = tpu.matmul %25, %26, %cst_21 {dimension_numbers = #tpu.dot_dimension_numbers<[1], [0], [0], [1], [0, 0, 1, 1], [], []>} : vector<128x128xbf16>, vector<128x128xbf16>, vector<128x128xf32> -> vector<128x128xf32>
      %28 = vector.broadcast %18 : vector<128x1xf32> to vector<128x128xf32>
      %29 = arith.mulf %28, %27 : vector<128x128xf32>
      %30 = arith.subf %23, %29 : vector<128x128xf32>
      %c0_22 = arith.constant 0 : index
      %c0_23 = arith.constant 0 : index
      %31 = vector.load %arg9[%c0_22, %c0_23] : memref<1x128xf32, #tpu.memory_space<vmem>>, vector<1x128xf32>
      %32 = vector.broadcast %31 : vector<1x128xf32> to vector<128x128xf32>
      %33 = arith.addf %30, %32 : vector<128x128xf32>
      %cst_24 = arith.constant 0.000000e+00 : f32
      %34 = vector.broadcast %cst_24 : f32 to vector<128x128xf32>
      %35 = arith.maximumf %33, %34 : vector<128x128xf32>
      %36 = arith.truncf %35 : vector<128x128xf32> to vector<128x128xbf16>
      %c0_25 = arith.constant 0 : index
      %c0_26 = arith.constant 0 : index
      %37 = vector.load %arg10[%c0_25, %c0_26] : memref<128x128xbf16, #tpu.memory_space<vmem>>, vector<128x128xbf16>
      %cst_27 = arith.constant dense<0.000000e+00> : vector<128x128xf32>
      %38 = tpu.matmul %36, %37, %cst_27 {dimension_numbers = #tpu.dot_dimension_numbers<[1], [0], [0], [1], [0, 0, 1, 1], [], []>} : vector<128x128xbf16>, vector<128x128xbf16>, vector<128x128xf32> -> vector<128x128xf32>
      %39 = vector.broadcast %20 : vector<128x1xf32> to vector<128x128xf32>
      %40 = arith.mulf %39, %38 : vector<128x128xf32>
      %41 = arith.truncf %40 : vector<128x128xf32> to vector<128x128xbf16>
      %c0_28 = arith.constant 0 : index
      %c0_29 = arith.constant 0 : index
      %42 = vector.load %arg11[%c0_28, %c0_29] : memref<128x128xbf16, #tpu.memory_space<vmem>>, vector<128x128xbf16>
      tpu.vector_store %arg11[%c0_28, %c0_29], %41 {strides = array<i32>} : memref<128x128xbf16, #tpu.memory_space<vmem>>, vector<128x128xbf16>,
    } else {
    }
    return
  }
  func.func @transform_0(%arg0: i32, %arg1: i32) -> (i32, i32) {
    %c0_i32 = arith.constant 0 : i32
    %c0_i32_0 = arith.constant 0 : i32
    return %arg0, %c0_i32 : i32, i32
  }
  func.func @transform_1(%arg0: i32, %arg1: i32) -> (i32, i32) {
    %c0_i32 = arith.constant 0 : i32
    %c0_i32_0 = arith.constant 0 : i32
    %c0_i32_1 = arith.constant 0 : i32
    return %c0_i32, %c0_i32_0 : i32, i32
  }
  func.func @transform_2(%arg0: i32, %arg1: i32) -> (i32, i32) {
    %c0_i32 = arith.constant 0 : i32
    return %arg0, %arg1 : i32, i32
  }
  func.func @transform_3(%arg0: i32, %arg1: i32) -> (i32, i32) {
    %c0_i32 = arith.constant 0 : i32
    %c0_i32_0 = arith.constant 0 : i32
    %c0_i32_1 = arith.constant 0 : i32
    return %c0_i32, %c0_i32_0 : i32, i32
  }
  func.func @transform_4(%arg0: i32, %arg1: i32) -> (i32, i32) {
    %c0_i32 = arith.constant 0 : i32
    %c0_i32_0 = arith.constant 0 : i32
    %c0_i32_1 = arith.constant 0 : i32
    return %c0_i32, %c0_i32_0 : i32, i32
  }
  func.func @transform_5(%arg0: i32, %arg1: i32) -> (i32, i32) {
    %c0_i32 = arith.constant 0 : i32
    %c0_i32_0 = arith.constant 0 : i32
    %c0_i32_1 = arith.constant 0 : i32
    return %c0_i32, %c0_i32_0 : i32, i32
  }
  func.func @transform_6(%arg0: i32, %arg1: i32) -> (i32, i32) {
    %c0_i32 = arith.constant 0 : i32
    %c0_i32_0 = arith.constant 0 : i32
    %c0_i32_1 = arith.constant 0 : i32
    return %c0_i32, %c0_i32_0 : i32, i32
  }
  func.func @transform_7(%arg0: i32, %arg1: i32) -> (i32, i32) {
    %c0_i32 = arith.constant 0 : i32
    %c0_i32_0 = arith.constant 0 : i32
    %c0_i32_1 = arith.constant 0 : i32
    return %c0_i32, %c0_i32_0 : i32, i32
  }
  func.func @transform_8(%arg0: i32, %arg1: i32) -> (i32, i32) {
    %c0_i32 = arith.constant 0 : i32
    %c0_i32_0 = arith.constant 0 : i32
    %c0_i32_1 = arith.constant 0 : i32
    return %c0_i32, %c0_i32_0 : i32, i32
  }
  func.func @transform_9(%arg0: i32, %arg1: i32) -> (i32, i32) {
    %c0_i32 = arith.constant 0 : i32
    %c0_i32_0 = arith.constant 0 : i32
    return %arg0, %c0_i32 : i32, i32
  }
}

</mosaic_0001>

<llo_original>
// kernel: tpu_custom_call.1
$region0: #{tpu_custom_call.1}
  #allocation0 [shape = 'u32[]', space=smem, size = 0x4, offset = 0x4, fixed_abs, tag = 'smem constant byte address 0x4 - core index']
  #allocation1 [shape = 'u32[144,128]{1,0:T(1,128)}', space=vmem, size = 0x12000, scoped, tag = 'internal scratch']
  #allocation2 [shape = 'f32[128,128]{1,0:T(8,128)}', space=vmem, size = 0x10000, scoped, tag = 'scratch operand']
  %s0 = inlined_call_operand.vmem [shape: bf16[128,128], index: 0, kind: input, shape index: {}]
  %s1 = inlined_call_operand.vmem [shape: bf16[128,128], index: 1, kind: input, shape index: {}]
  %s2 = inlined_call_operand.vmem [shape: bf16[128,128], index: 2, kind: input, shape index: {}]
  %s3 = inlined_call_operand.vmem [shape: f32[128,1], index: 3, kind: input, shape index: {}]
  %s4 = inlined_call_operand.vmem [shape: f32[128,1], index: 4, kind: input, shape index: {}]
  %s5 = inlined_call_operand.vmem [shape: bf16[128,128], index: 5, kind: input, shape index: {}]
  %s6 = inlined_call_operand.hbm [shape: bf16[128,128], index: 6, kind: input, shape index: {}]
  %s7 = inlined_call_operand.vmem [shape: f32[1,128], index: 7, kind: input, shape index: {}]
  %s8 = inlined_call_operand.hbm [shape: bf16[128,128], index: 8, kind: input, shape index: {}]
  %s9 = inlined_call_operand.hbm [shape: bf16[128,128], index: 9, kind: output, shape index: {}]
  %s10 = sld [smem:[#allocation0]]
  $region62: #{tpu_custom_call.1} parent=0
    _
  %s12 = ssub.s32 1, %s10
  %s13 = scalar_select 0, %s12, %s10
  $region1: #{tpu_custom_call.1} parent=0
    #allocation3 [shape = 'u8[32768]{0}', space=vmem, size = 0x8000, scoped, tag = 'input window, operand 6, single buffered']
    #allocation4 [shape = 's32[1]{0}', space=sflag, size = 0x4, scoped, tag = 'scoped memory for tpu_custom_call.1']
    #allocation5 [shape = 's32[1]{0}', space=sflag, size = 0x4, scoped, tag = 'scoped memory for tpu_custom_call.1']
    #allocation6 [shape = 'u8[32768]{0}', space=vmem, size = 0x8000, scoped, tag = 'input window, operand 8, single buffered']
    #allocation7 [shape = 's32[1]{0}', space=sflag, size = 0x4, scoped, tag = 'scoped memory for tpu_custom_call.1']
    #allocation8 [shape = 'u8[32768]{0}', space=vmem, size = 0x8000, scoped, tag = 'output window, operand 0, single buffered']
    %14 = vsyncpa [#allocation4], 0
    %15 = vsyncpa [#allocation7], 0
    %16 = vsyncpa [#allocation5], 0
    // Predicated region
    $region2: #{tpu_custom_call.1} parent=1 // pred_check
      _
    $region3: #{tpu_custom_call.1} parent=1 // pred_check_branch
      %18 = sbr.rel (0) target = $region5
    $region4: #{tpu_custom_call.1} parent=1 // pred_region
      _
    $region5: #{tpu_custom_call.1} parent=1 // pred_fallthru
      _
    // Predicated region
    $region6: #{tpu_custom_call.1} parent=1 // pred_check
      _
    $region7: #{tpu_custom_call.1} parent=1 // pred_check_branch
      %20 = sbr.rel (0) target = $region9
    $region8: #{tpu_custom_call.1} parent=1 // pred_region
      _
    $region9: #{tpu_custom_call.1} parent=1 // pred_fallthru
      _
    // Predicated region
    $region10: #{tpu_custom_call.1} parent=1 // pred_check
      _
    $region11: #{tpu_custom_call.1} parent=1 // pred_check_branch
      %22 = sbr.rel (0) target = $region13
    $region12: #{tpu_custom_call.1} parent=1 // pred_region
      _
    $region13: #{tpu_custom_call.1} parent=1 // pred_fallthru
      _
    // Predicated region
    $region14: #{tpu_custom_call.1} parent=1 // pred_check
      _
    $region15: #{tpu_custom_call.1} parent=1 // pred_check_branch
      %24 = sbr.rel (0) target = $region17
    $region16: #{tpu_custom_call.1} parent=1 // pred_region
      _
    $region17: #{tpu_custom_call.1} parent=1 // pred_fallthru
      _
    // Predicated region
    $region18: #{tpu_custom_call.1} parent=1 // pred_check
      _
    $region19: #{tpu_custom_call.1} parent=1 // pred_check_branch
      %26 = sbr.rel (0) target = $region21
    $region20: #{tpu_custom_call.1} parent=1 // pred_region
      _
    $region21: #{tpu_custom_call.1} parent=1 // pred_fallthru
      _
    // Predicated region
    $region22: #{tpu_custom_call.1} parent=1 // pred_check
      _
    $region23: #{tpu_custom_call.1} parent=1 // pred_check_branch
      %28 = sbr.rel (0) target = $region25
    $region24: #{tpu_custom_call.1} parent=1 // pred_region
      _
    $region25: #{tpu_custom_call.1} parent=1 // pred_fallthru
      _
    // Predicated region
    $region26: #{tpu_custom_call.1} parent=1 // pred_check
      _
    $region27: #{tpu_custom_call.1} parent=1 // pred_check_branch
      %30 = sbr.rel (0) target = $region29
    $region28: #{tpu_custom_call.1} parent=1 // pred_region
      %s32 = ssub.s32 1024, 1024
      %33 = vsyncadd [#allocation4], %s32
      %s34 = sshll.u32 [#allocation3], 4
      %s35 = int_to_ptr.vmem [resolvable:$true] %s34
      %40 = dma.hbm_to_vmem [thread:$0]  %s6, 1024, %s35, [#allocation4], 64, 64, 4
    $region29: #{tpu_custom_call.1} parent=1 // pred_fallthru
      _
    // Predicated region
    $region30: #{tpu_custom_call.1} parent=1 // pred_check
      _
    $region31: #{tpu_custom_call.1} parent=1 // pred_check_branch
      %42 = sbr.rel (0) target = $region33
    $region32: #{tpu_custom_call.1} parent=1 // pred_region
      _
    $region33: #{tpu_custom_call.1} parent=1 // pred_fallthru
      _
    // Predicated region
    $region34: #{tpu_custom_call.1} parent=1 // pred_check
      _
    $region35: #{tpu_custom_call.1} parent=1 // pred_check_branch
      %44 = sbr.rel (0) target = $region37
    $region36: #{tpu_custom_call.1} parent=1 // pred_region
      %s46 = ssub.s32 1024, 1024
      %47 = vsyncadd [#allocation7], %s46
      %s48 = sshll.u32 [#allocation6], 4
      %s49 = int_to_ptr.vmem [resolvable:$true] %s48
      %54 = dma.hbm_to_vmem [thread:$0]  %s8, 1024, %s49, [#allocation7], 64, 64, 4
    $region37: #{tpu_custom_call.1} parent=1 // pred_fallthru
      _
    // Predicated region
    $region38: #{tpu_custom_call.1} parent=1 // pred_check
      _
    $region39: #{tpu_custom_call.1} parent=1 // pred_check_branch
      %56 = sbr.rel (0) target = $region41
    $region40: #{tpu_custom_call.1} parent=1 // pred_region
      %57 = dma.done [#allocation4], 1024
    $region41: #{tpu_custom_call.1} parent=1 // pred_fallthru
      _
    // Predicated region
    $region42: #{tpu_custom_call.1} parent=1 // pred_check
      _
    $region43: #{tpu_custom_call.1} parent=1 // pred_check_branch
      %59 = sbr.rel (0) target = $region45
    $region44: #{tpu_custom_call.1} parent=1 // pred_region
      %60 = dma.done [#allocation7], 1024
    $region45: #{tpu_custom_call.1} parent=1 // pred_fallthru
      _
    %p62 = scmp.eq.s32.totalorder 0, 0
    // Predicated region
    $region46: #{tpu_custom_call.1} parent=1 // pred_check
      %p63 = pneg %p62
    $region47: #{tpu_custom_call.1} parent=1 // pred_check_branch
      %65 = sbr.rel (%p63) target = $region49
    $region48: #{tpu_custom_call.1} parent=1 // pred_region
      %66 = vst [vmem:[#allocation2] sm:$0xff] 0.0
      %67 = vst [vmem:[#allocation2 + $0x8] sm:$0xff] 0.0
      %68 = vst [vmem:[#allocation2 + $0x10] sm:$0xff] 0.0
      %69 = vst [vmem:[#allocation2 + $0x18] sm:$0xff] 0.0
      %70 = vst [vmem:[#allocation2 + $0x20] sm:$0xff] 0.0
      %71 = vst [vmem:[#allocation2 + $0x28] sm:$0xff] 0.0
      %72 = vst [vmem:[#allocation2 + $0x30] sm:$0xff] 0.0
      %73 = vst [vmem:[#allocation2 + $0x38] sm:$0xff] 0.0
      %74 = vst [vmem:[#allocation2 + $0x40] sm:$0xff] 0.0
      %75 = vst [vmem:[#allocation2 + $0x48] sm:$0xff] 0.0
      %76 = vst [vmem:[#allocation2 + $0x50] sm:$0xff] 0.0
      %77 = vst [vmem:[#allocation2 + $0x58] sm:$0xff] 0.0
      %78 = vst [vmem:[#allocation2 + $0x60] sm:$0xff] 0.0
      %79 = vst [vmem:[#allocation2 + $0x68] sm:$0xff] 0.0
      %80 = vst [vmem:[#allocation2 + $0x70] sm:$0xff] 0.0
      %81 = vst [vmem:[#allocation2 + $0x78] sm:$0xff] 0.0
    $region49: #{tpu_custom_call.1} parent=1 // pred_fallthru
      _
    %s82 = smul.u32 0, 128
    %v83 = vld [vmem:[#allocation2] sm:$0xff]
    %v84 = vld [vmem:[#allocation2 + $0x8] sm:$0xff]
    %v85 = vld [vmem:[#allocation2 + $0x10] sm:$0xff]
    %v86 = vld [vmem:[#allocation2 + $0x18] sm:$0xff]
    %v87 = vld [vmem:[#allocation2 + $0x20] sm:$0xff]
    %v88 = vld [vmem:[#allocation2 + $0x28] sm:$0xff]
    %v89 = vld [vmem:[#allocation2 + $0x30] sm:$0xff]
    %v90 = vld [vmem:[#allocation2 + $0x38] sm:$0xff]
    %v91 = vld [vmem:[#allocation2 + $0x40] sm:$0xff]
    %v92 = vld [vmem:[#allocation2 + $0x48] sm:$0xff]
    %v93 = vld [vmem:[#allocation2 + $0x50] sm:$0xff]
    %v94 = vld [vmem:[#allocation2 + $0x58] sm:$0xff]
    %v95 = vld [vmem:[#allocation2 + $0x60] sm:$0xff]
    %v96 = vld [vmem:[#allocation2 + $0x68] sm:$0xff]
    %v97 = vld [vmem:[#allocation2 + $0x70] sm:$0xff]
    %v98 = vld [vmem:[#allocation2 + $0x78] sm:$0xff]
    %v99 = vld [vmem:[%s2] sm:$0xf]
    %v100 = vld [vmem:[%s2 + $0x4] sm:$0xf]
    %v101 = vld [vmem:[%s2 + $0x8] sm:$0xf]
    %v102 = vld [vmem:[%s2 + $0xc] sm:$0xf]
    %v103 = vld [vmem:[%s2 + $0x10] sm:$0xf]
    %v104 = vld [vmem:[%s2 + $0x14] sm:$0xf]
    %v105 = vld [vmem:[%s2 + $0x18] sm:$0xf]
    %v106 = vld [vmem:[%s2 + $0x1c] sm:$0xf]
    %v107 = vld [vmem:[%s2 + $0x20] sm:$0xf]
    %v108 = vld [vmem:[%s2 + $0x24] sm:$0xf]
    %v109 = vld [vmem:[%s2 + $0x28] sm:$0xf]
    %v110 = vld [vmem:[%s2 + $0x2c] sm:$0xf]
    %v111 = vld [vmem:[%s2 + $0x30] sm:$0xf]
    %v112 = vld [vmem:[%s2 + $0x34] sm:$0xf]
    %v113 = vld [vmem:[%s2 + $0x38] sm:$0xf]
    %v114 = vld [vmem:[%s2 + $0x3c] sm:$0xf]
    %s115 = sshra.s32 %s82, 3
    %s116 = sand.u32 %s82, 7
    %s117 = smul.addr %s115, 4
    %s118 = scalar_lea.vmem %s1, %s117
    %v119 = vld [vmem:[%s118] sm:$0xf]
    %v120 = vld [vmem:[%s118 + $0x4] sm:$0xf]
    %v121 = vld [vmem:[%s118 + $0x8] sm:$0xf]
    %v122 = vld [vmem:[%s118 + $0xc] sm:$0xf]
    %v123 = vld [vmem:[%s118 + $0x10] sm:$0xf]
    %v124 = vld [vmem:[%s118 + $0x14] sm:$0xf]
    %v125 = vld [vmem:[%s118 + $0x18] sm:$0xf]
    %v126 = vld [vmem:[%s118 + $0x1c] sm:$0xf]
    %v127 = vld [vmem:[%s118 + $0x20] sm:$0xf]
    %v128 = vld [vmem:[%s118 + $0x24] sm:$0xf]
    %v129 = vld [vmem:[%s118 + $0x28] sm:$0xf]
    %v130 = vld [vmem:[%s118 + $0x2c] sm:$0xf]
    %v131 = vld [vmem:[%s118 + $0x30] sm:$0xf]
    %v132 = vld [vmem:[%s118 + $0x34] sm:$0xf]
    %v133 = vld [vmem:[%s118 + $0x38] sm:$0xf]
    %v134 = vld [vmem:[%s118 + $0x3c] sm:$0xf]
    %v151 = vunpack.c.l.b16 %v99
    %v152 = vunpack.c.l.b16 %v100
    %v153 = vunpack.c.l.b16 %v101
    %v154 = vunpack.c.l.b16 %v102
    %v155 = vunpack.c.l.b16 %v103
    %v156 = vunpack.c.l.b16 %v104
    %v157 = vunpack.c.l.b16 %v105
    %v158 = vunpack.c.l.b16 %v106
    %v159 = vunpack.c.l.b16 %v107
    %v160 = vunpack.c.l.b16 %v108
    %v161 = vunpack.c.l.b16 %v109
    %v162 = vunpack.c.l.b16 %v110
    %v163 = vunpack.c.l.b16 %v111
    %v164 = vunpack.c.l.b16 %v112
    %v165 = vunpack.c.l.b16 %v113
    %v166 = vunpack.c.l.b16 %v114
    %v167 = vpack.c.b16 %v152, %v151
    %v168 = vpack.c.b16 %v154, %v153
    %v169 = vpack.c.b16 %v156, %v155
    %v170 = vpack.c.b16 %v158, %v157
    %v171 = vpack.c.b16 %v160, %v159
    %v172 = vpack.c.b16 %v162, %v161
    %v173 = vpack.c.b16 %v164, %v163
    %v174 = vpack.c.b16 %v166, %v165
    %v199 = vunpack.c.l.b16 %v119
    %v200 = vunpack.c.l.b16 %v120
    %v201 = vunpack.c.l.b16 %v121
    %v202 = vunpack.c.l.b16 %v122
    %v203 = vunpack.c.l.b16 %v123
    %v204 = vunpack.c.l.b16 %v124
    %v205 = vunpack.c.l.b16 %v125
    %v206 = vunpack.c.l.b16 %v126
    %v207 = vunpack.c.l.b16 %v127
    %v208 = vunpack.c.l.b16 %v128
    %v209 = vunpack.c.l.b16 %v129
    %v210 = vunpack.c.l.b16 %v130
    %v211 = vunpack.c.l.b16 %v131
    %v212 = vunpack.c.l.b16 %v132
    %v213 = vunpack.c.l.b16 %v133
    %v214 = vunpack.c.l.b16 %v134
    %v215 = vpack.c.b16 %v200, %v199
    %v216 = vpack.c.b16 %v202, %v201
    %v217 = vpack.c.b16 %v204, %v203
    %v218 = vpack.c.b16 %v206, %v205
    %v219 = vpack.c.b16 %v208, %v207
    %v220 = vpack.c.b16 %v210, %v209
    %v221 = vpack.c.b16 %v212, %v211
    %v222 = vpack.c.b16 %v214, %v213
    %231 = vmatprep.subr.bf16.mxu0 0
    %232 = vmatpush1.bf16.msra.mxu0 %v215
    %233 = vmatprep.subr.bf16.mxu0 0
    %234 = vmatpush1.bf16.msra.mxu0 %v216
    %235 = vmatprep.subr.bf16.mxu0 0
    %236 = vmatpush1.bf16.msra.mxu0 %v217
    %237 = vmatprep.subr.bf16.mxu0 0
    %238 = vmatpush1.bf16.msra.mxu0 %v218
    %239 = vmatprep.subr.bf16.mxu0 0
    %240 = vmatpush1.bf16.msra.mxu0 %v219
    %241 = vmatprep.subr.bf16.mxu0 0
    %242 = vmatpush1.bf16.msra.mxu0 %v220
    %243 = vmatprep.subr.bf16.mxu0 0
    %244 = vmatpush1.bf16.msra.mxu0 %v221
    %245 = vmatprep.subr.bf16.mxu0 0
    %246 = vmatpush1.bf16.msra.mxu0 %v222
    %247 = vmatprep.subr.bf16.mxu0 0
    %248 = vmatpush1.bf16.msra.mxu0 0
    %249 = vmatprep.subr.bf16.mxu0 0
    %250 = vmatpush1.bf16.msra.mxu0 0
    %251 = vmatprep.subr.bf16.mxu0 0
    %252 = vmatpush1.bf16.msra.mxu0 0
    %253 = vmatprep.subr.bf16.mxu0 0
    %254 = vmatpush1.bf16.msra.mxu0 0
    %255 = vmatprep.subr.bf16.mxu0 0
    %256 = vmatpush1.bf16.msra.mxu0 0
    %257 = vmatprep.subr.bf16.mxu0 0
    %258 = vmatpush1.bf16.msra.mxu0 0
    %259 = vmatprep.subr.bf16.mxu0 0
    %260 = vmatpush1.bf16.msra.mxu0 0
    %261 = vmatprep.subr.bf16.mxu0 0
    %262 = vmatpush1.bf16.msra.mxu0 0
    %263 = vmatprep.mubr.bf16.mxu0 0
    %264 = vmatmul.mubr.bf16.gmra.mrb[0].mxu0 %v167
    %v265 = vpop.f32.mrb[0].mxu0
    %v266 = vadd.f32 0.0, %v265
    %v267 = vpop.f32.mrb[0].mxu0
    %v268 = vpop.f32.mrb[0].mxu0
    %v269 = vadd.f32 0.0, %v268
    %v270 = vpop.f32.mrb[0].mxu0
    %271 = vmatprep.mubr.bf16.mxu0 0
    %272 = vmatmul.mubr.bf16.gmra.mrb[0].mxu0 %v168
    %v273 = vpop.f32.mrb[0].mxu0
    %v274 = vadd.f32 0.0, %v273
    %v275 = vpop.f32.mrb[0].mxu0
    %v276 = vpop.f32.mrb[0].mxu0
    %v277 = vadd.f32 0.0, %v276
    %v278 = vpop.f32.mrb[0].mxu0
    %279 = vmatprep.mubr.bf16.mxu0 0
    %280 = vmatmul.mubr.bf16.gmra.mrb[0].mxu0 %v169
    %v281 = vpop.f32.mrb[0].mxu0
    %v282 = vadd.f32 0.0, %v281
    %v283 = vpop.f32.mrb[0].mxu0
    %v284 = vpop.f32.mrb[0].mxu0
    %v285 = vadd.f32 0.0, %v284
    %v286 = vpop.f32.mrb[0].mxu0
    %287 = vmatprep.mubr.bf16.mxu0 0
    %288 = vmatmul.mubr.bf16.gmra.mrb[0].mxu0 %v170
    %v289 = vpop.f32.mrb[0].mxu0
    %v290 = vadd.f32 0.0, %v289
    %v291 = vpop.f32.mrb[0].mxu0
    %v292 = vpop.f32.mrb[0].mxu0
    %v293 = vadd.f32 0.0, %v292
    %v294 = vpop.f32.mrb[0].mxu0
    %295 = vmatprep.mubr.bf16.mxu0 0
    %296 = vmatmul.mubr.bf16.gmra.mrb[0].mxu0 %v171
    %v297 = vpop.f32.mrb[0].mxu0
    %v298 = vadd.f32 0.0, %v297
    %v299 = vpop.f32.mrb[0].mxu0
    %v300 = vpop.f32.mrb[0].mxu0
    %v301 = vadd.f32 0.0, %v300
    %v302 = vpop.f32.mrb[0].mxu0
    %303 = vmatprep.mubr.bf16.mxu0 0
    %304 = vmatmul.mubr.bf16.gmra.mrb[0].mxu0 %v172
    %v305 = vpop.f32.mrb[0].mxu0
    %v306 = vadd.f32 0.0, %v305
    %v307 = vpop.f32.mrb[0].mxu0
    %v308 = vpop.f32.mrb[0].mxu0
    %v309 = vadd.f32 0.0, %v308
    %v310 = vpop.f32.mrb[0].mxu0
    %311 = vmatprep.mubr.bf16.mxu0 0
    %312 = vmatmul.mubr.bf16.gmra.mrb[0].mxu0 %v173
    %v313 = vpop.f32.mrb[0].mxu0
    %v314 = vadd.f32 0.0, %v313
    %v315 = vpop.f32.mrb[0].mxu0
    %v316 = vpop.f32.mrb[0].mxu0
    %v317 = vadd.f32 0.0, %v316
    %v318 = vpop.f32.mrb[0].mxu0
    %319 = vmatprep.mubr.bf16.mxu0 0
    %320 = vmatmul.mubr.bf16.gmra.mrb[0].mxu0 %v174
    %v321 = vpop.f32.mrb[0].mxu0
    %v322 = vadd.f32 0.0, %v321
    %v323 = vpop.f32.mrb[0].mxu0
    %v324 = vpop.f32.mrb[0].mxu0
    %v325 = vadd.f32 0.0, %v324
    %v326 = vpop.f32.mrb[0].mxu0
    %327 = vdwg.mxu0
    %v328 = vadd.f32 %v83, %v266
    %v329 = vadd.f32 %v84, %v269
    %v330 = vadd.f32 %v85, %v274
    %v331 = vadd.f32 %v86, %v277
    %v332 = vadd.f32 %v87, %v282
    %v333 = vadd.f32 %v88, %v285
    %v334 = vadd.f32 %v89, %v290
    %v335 = vadd.f32 %v90, %v293
    %v336 = vadd.f32 %v91, %v298
    %v337 = vadd.f32 %v92, %v301
    %v338 = vadd.f32 %v93, %v306
    %v339 = vadd.f32 %v94, %v309
    %v340 = vadd.f32 %v95, %v314
    %v341 = vadd.f32 %v96, %v317
    %v342 = vadd.f32 %v97, %v322
    %v343 = vadd.f32 %v98, %v325
    %344 = vst [vmem:[#allocation2] sm:$0xff] %v328
    %345 = vst [vmem:[#allocation2 + $0x8] sm:$0xff] %v329
    %346 = vst [vmem:[#allocation2 + $0x10] sm:$0xff] %v330
    %347 = vst [vmem:[#allocation2 + $0x18] sm:$0xff] %v331
    %348 = vst [vmem:[#allocation2 + $0x20] sm:$0xff] %v332
    %349 = vst [vmem:[#allocation2 + $0x28] sm:$0xff] %v333
    %350 = vst [vmem:[#allocation2 + $0x30] sm:$0xff] %v334
    %351 = vst [vmem:[#allocation2 + $0x38] sm:$0xff] %v335
    %352 = vst [vmem:[#allocation2 + $0x40] sm:$0xff] %v336
    %353 = vst [vmem:[#allocation2 + $0x48] sm:$0xff] %v337
    %354 = vst [vmem:[#allocation2 + $0x50] sm:$0xff] %v338
    %355 = vst [vmem:[#allocation2 + $0x58] sm:$0xff] %v339
    %356 = vst [vmem:[#allocation2 + $0x60] sm:$0xff] %v340
    %357 = vst [vmem:[#allocation2 + $0x68] sm:$0xff] %v341
    %358 = vst [vmem:[#allocation2 + $0x70] sm:$0xff] %v342
    %359 = vst [vmem:[#allocation2 + $0x78] sm:$0xff] %v343
    // Predicated region
    $region50: #{tpu_custom_call.1} parent=1 // pred_check
      %p360 = pneg %p62
    $region51: #{tpu_custom_call.1} parent=1 // pred_check_branch
      %362 = sbr.rel (%p360) target = $region53
    $region52: #{tpu_custom_call.1} parent=1 // pred_region
      %s363 = smul.u32 0, 128
      %s364 = scalar_lea.vmem %s3, %s363
      %v365 = vld [vmem:[%s364] sm:$0xff]
      %v366 = vld [vmem:[%s364 + $0x8] sm:$0xff]
      %v367 = vld [vmem:[%s364 + $0x10] sm:$0xff]
      %v368 = vld [vmem:[%s364 + $0x18] sm:$0xff]
      %v369 = vld [vmem:[%s364 + $0x20] sm:$0xff]
      %v370 = vld [vmem:[%s364 + $0x28] sm:$0xff]
      %v371 = vld [vmem:[%s364 + $0x30] sm:$0xff]
      %v372 = vld [vmem:[%s364 + $0x38] sm:$0xff]
      %v373 = vld [vmem:[%s364 + $0x40] sm:$0xff]
      %v374 = vld [vmem:[%s364 + $0x48] sm:$0xff]
      %v375 = vld [vmem:[%s364 + $0x50] sm:$0xff]
      %v376 = vld [vmem:[%s364 + $0x58] sm:$0xff]
      %v377 = vld [vmem:[%s364 + $0x60] sm:$0xff]
      %v378 = vld [vmem:[%s364 + $0x68] sm:$0xff]
      %v379 = vld [vmem:[%s364 + $0x70] sm:$0xff]
      %v380 = vld [vmem:[%s364 + $0x78] sm:$0xff]
      %s381 = scalar_lea.vmem %s4, %s363
      %v382 = vld [vmem:[%s381] sm:$0xff]
      %v383 = vld [vmem:[%s381 + $0x8] sm:$0xff]
      %v384 = vld [vmem:[%s381 + $0x10] sm:$0xff]
      %v385 = vld [vmem:[%s381 + $0x18] sm:$0xff]
      %v386 = vld [vmem:[%s381 + $0x20] sm:$0xff]
      %v387 = vld [vmem:[%s381 + $0x28] sm:$0xff]
      %v388 = vld [vmem:[%s381 + $0x30] sm:$0xff]
      %v389 = vld [vmem:[%s381 + $0x38] sm:$0xff]
      %v390 = vld [vmem:[%s381 + $0x40] sm:$0xff]
      %v391 = vld [vmem:[%s381 + $0x48] sm:$0xff]
      %v392 = vld [vmem:[%s381 + $0x50] sm:$0xff]
      %v393 = vld [vmem:[%s381 + $0x58] sm:$0xff]
      %v394 = vld [vmem:[%s381 + $0x60] sm:$0xff]
      %v395 = vld [vmem:[%s381 + $0x68] sm:$0xff]
      %v396 = vld [vmem:[%s381 + $0x70] sm:$0xff]
      %v397 = vld [vmem:[%s381 + $0x78] sm:$0xff]
      %v398 = vld [vmem:[%s0] sm:$0xf]
      %v399 = vld [vmem:[%s0 + $0x4] sm:$0xf]
      %v400 = vld [vmem:[%s0 + $0x8] sm:$0xf]
      %v401 = vld [vmem:[%s0 + $0xc] sm:$0xf]
      %v402 = vld [vmem:[%s0 + $0x10] sm:$0xf]
      %v403 = vld [vmem:[%s0 + $0x14] sm:$0xf]
      %v404 = vld [vmem:[%s0 + $0x18] sm:$0xf]
      %v405 = vld [vmem:[%s0 + $0x1c] sm:$0xf]
      %v406 = vld [vmem:[%s0 + $0x20] sm:$0xf]
      %v407 = vld [vmem:[%s0 + $0x24] sm:$0xf]
      %v408 = vld [vmem:[%s0 + $0x28] sm:$0xf]
      %v409 = vld [vmem:[%s0 + $0x2c] sm:$0xf]
      %v410 = vld [vmem:[%s0 + $0x30] sm:$0xf]
      %v411 = vld [vmem:[%s0 + $0x34] sm:$0xf]
      %v412 = vld [vmem:[%s0 + $0x38] sm:$0xf]
      %v413 = vld [vmem:[%s0 + $0x3c] sm:$0xf]
      %v414 = vld [vmem:[%s5] sm:$0xf]
      %v415 = vld [vmem:[%s5 + $0x4] sm:$0xf]
      %v416 = vld [vmem:[%s5 + $0x8] sm:$0xf]
      %v417 = vld [vmem:[%s5 + $0xc] sm:$0xf]
      %v418 = vld [vmem:[%s5 + $0x10] sm:$0xf]
      %v419 = vld [vmem:[%s5 + $0x14] sm:$0xf]
      %v420 = vld [vmem:[%s5 + $0x18] sm:$0xf]
      %v421 = vld [vmem:[%s5 + $0x1c] sm:$0xf]
      %v422 = vld [vmem:[%s5 + $0x20] sm:$0xf]
      %v423 = vld [vmem:[%s5 + $0x24] sm:$0xf]
      %v424 = vld [vmem:[%s5 + $0x28] sm:$0xf]
      %v425 = vld [vmem:[%s5 + $0x2c] sm:$0xf]
      %v426 = vld [vmem:[%s5 + $0x30] sm:$0xf]
      %v427 = vld [vmem:[%s5 + $0x34] sm:$0xf]
      %v428 = vld [vmem:[%s5 + $0x38] sm:$0xf]
      %v429 = vld [vmem:[%s5 + $0x3c] sm:$0xf]
      %v446 = vunpack.c.l.b16 %v398
      %v447 = vunpack.c.l.b16 %v399
      %v448 = vunpack.c.l.b16 %v400
      %v449 = vunpack.c.l.b16 %v401
      %v450 = vunpack.c.l.b16 %v402
      %v451 = vunpack.c.l.b16 %v403
      %v452 = vunpack.c.l.b16 %v404
      %v453 = vunpack.c.l.b16 %v405
      %v454 = vunpack.c.l.b16 %v406
      %v455 = vunpack.c.l.b16 %v407
      %v456 = vunpack.c.l.b16 %v408
      %v457 = vunpack.c.l.b16 %v409
      %v458 = vunpack.c.l.b16 %v410
      %v459 = vunpack.c.l.b16 %v411
      %v460 = vunpack.c.l.b16 %v412
      %v461 = vunpack.c.l.b16 %v413
      %v462 = vpack.c.b16 %v447, %v446
      %v463 = vpack.c.b16 %v449, %v448
      %v464 = vpack.c.b16 %v451, %v450
      %v465 = vpack.c.b16 %v453, %v452
      %v466 = vpack.c.b16 %v455, %v454
      %v467 = vpack.c.b16 %v457, %v456
      %v468 = vpack.c.b16 %v459, %v458
      %v469 = vpack.c.b16 %v461, %v460
      %v494 = vunpack.c.l.b16 %v414
      %v495 = vunpack.c.l.b16 %v415
      %v496 = vunpack.c.l.b16 %v416
      %v497 = vunpack.c.l.b16 %v417
      %v498 = vunpack.c.l.b16 %v418
      %v499 = vunpack.c.l.b16 %v419
      %v500 = vunpack.c.l.b16 %v420
      %v501 = vunpack.c.l.b16 %v421
      %v502 = vunpack.c.l.b16 %v422
      %v503 = vunpack.c.l.b16 %v423
      %v504 = vunpack.c.l.b16 %v424
      %v505 = vunpack.c.l.b16 %v425
      %v506 = vunpack.c.l.b16 %v426
      %v507 = vunpack.c.l.b16 %v427
      %v508 = vunpack.c.l.b16 %v428
      %v509 = vunpack.c.l.b16 %v429
      %v510 = vpack.c.b16 %v495, %v494
      %v511 = vpack.c.b16 %v497, %v496
      %v512 = vpack.c.b16 %v499, %v498
      %v513 = vpack.c.b16 %v501, %v500
      %v514 = vpack.c.b16 %v503, %v502
      %v515 = vpack.c.b16 %v505, %v504
      %v516 = vpack.c.b16 %v507, %v506
      %v517 = vpack.c.b16 %v509, %v508
      %526 = vmatprep.subr.bf16.mxu0 0
      %527 = vmatpush1.bf16.msra.mxu0 %v510
      %528 = vmatprep.subr.bf16.mxu0 0
      %529 = vmatpush1.bf16.msra.mxu0 %v511
      %530 = vmatprep.subr.bf16.mxu0 0
      %531 = vmatpush1.bf16.msra.mxu0 %v512
      %532 = vmatprep.subr.bf16.mxu0 0
      %533 = vmatpush1.bf16.msra.mxu0 %v513
      %534 = vmatprep.subr.bf16.mxu0 0
      %535 = vmatpush1.bf16.msra.mxu0 %v514
      %536 = vmatprep.subr.bf16.mxu0 0
      %537 = vmatpush1.bf16.msra.mxu0 %v515
      %538 = vmatprep.subr.bf16.mxu0 0
      %539 = vmatpush1.bf16.msra.mxu0 %v516
      %540 = vmatprep.subr.bf16.mxu0 0
      %541 = vmatpush1.bf16.msra.mxu0 %v517
      %542 = vmatprep.subr.bf16.mxu0 0
      %543 = vmatpush1.bf16.msra.mxu0 0
      %544 = vmatprep.subr.bf16.mxu0 0
      %545 = vmatpush1.bf16.msra.mxu0 0
      %546 = vmatprep.subr.bf16.mxu0 0
      %547 = vmatpush1.bf16.msra.mxu0 0
      %548 = vmatprep.subr.bf16.mxu0 0
      %549 = vmatpush1.bf16.msra.mxu0 0
      %550 = vmatprep.subr.bf16.mxu0 0
      %551 = vmatpush1.bf16.msra.mxu0 0
      %552 = vmatprep.subr.bf16.mxu0 0
      %553 = vmatpush1.bf16.msra.mxu0 0
      %554 = vmatprep.subr.bf16.mxu0 0
      %555 = vmatpush1.bf16.msra.mxu0 0
      %556 = vmatprep.subr.bf16.mxu0 0
      %557 = vmatpush1.bf16.msra.mxu0 0
      %558 = vmatprep.mubr.bf16.mxu0 0
      %559 = vmatmul.mubr.bf16.gmra.mrb[0].mxu0 %v462
      %v560 = vpop.f32.mrb[0].mxu0
      %v561 = vadd.f32 0.0, %v560
      %v562 = vpop.f32.mrb[0].mxu0
      %v563 = vpop.f32.mrb[0].mxu0
      %v564 = vadd.f32 0.0, %v563
      %v565 = vpop.f32.mrb[0].mxu0
      %566 = vmatprep.mubr.bf16.mxu0 0
      %567 = vmatmul.mubr.bf16.gmra.mrb[0].mxu0 %v463
      %v568 = vpop.f32.mrb[0].mxu0
      %v569 = vadd.f32 0.0, %v568
      %v570 = vpop.f32.mrb[0].mxu0
      %v571 = vpop.f32.mrb[0].mxu0
      %v572 = vadd.f32 0.0, %v571
      %v573 = vpop.f32.mrb[0].mxu0
      %574 = vmatprep.mubr.bf16.mxu0 0
      %575 = vmatmul.mubr.bf16.gmra.mrb[0].mxu0 %v464
      %v576 = vpop.f32.mrb[0].mxu0
      %v577 = vadd.f32 0.0, %v576
      %v578 = vpop.f32.mrb[0].mxu0
      %v579 = vpop.f32.mrb[0].mxu0
      %v580 = vadd.f32 0.0, %v579
      %v581 = vpop.f32.mrb[0].mxu0
      %582 = vmatprep.mubr.bf16.mxu0 0
      %583 = vmatmul.mubr.bf16.gmra.mrb[0].mxu0 %v465
      %v584 = vpop.f32.mrb[0].mxu0
      %v585 = vadd.f32 0.0, %v584
      %v586 = vpop.f32.mrb[0].mxu0
      %v587 = vpop.f32.mrb[0].mxu0
      %v588 = vadd.f32 0.0, %v587
      %v589 = vpop.f32.mrb[0].mxu0
      %590 = vmatprep.mubr.bf16.mxu0 0
      %591 = vmatmul.mubr.bf16.gmra.mrb[0].mxu0 %v466
      %v592 = vpop.f32.mrb[0].mxu0
      %v593 = vadd.f32 0.0, %v592
      %v594 = vpop.f32.mrb[0].mxu0
      %v595 = vpop.f32.mrb[0].mxu0
      %v596 = vadd.f32 0.0, %v595
      %v597 = vpop.f32.mrb[0].mxu0
      %598 = vmatprep.mubr.bf16.mxu0 0
      %599 = vmatmul.mubr.bf16.gmra.mrb[0].mxu0 %v467
      %v600 = vpop.f32.mrb[0].mxu0
      %v601 = vadd.f32 0.0, %v600
      %v602 = vpop.f32.mrb[0].mxu0
      %v603 = vpop.f32.mrb[0].mxu0
      %v604 = vadd.f32 0.0, %v603
      %v605 = vpop.f32.mrb[0].mxu0
      %606 = vmatprep.mubr.bf16.mxu0 0
      %607 = vmatmul.mubr.bf16.gmra.mrb[0].mxu0 %v468
      %v608 = vpop.f32.mrb[0].mxu0
      %v609 = vadd.f32 0.0, %v608
      %v610 = vpop.f32.mrb[0].mxu0
      %v611 = vpop.f32.mrb[0].mxu0
      %v612 = vadd.f32 0.0, %v611
      %v613 = vpop.f32.mrb[0].mxu0
      %614 = vmatprep.mubr.bf16.mxu0 0
      %615 = vmatmul.mubr.bf16.gmra.mrb[0].mxu0 %v469
      %v616 = vpop.f32.mrb[0].mxu0
      %v617 = vadd.f32 0.0, %v616
      %v618 = vpop.f32.mrb[0].mxu0
      %v619 = vpop.f32.mrb[0].mxu0
      %v620 = vadd.f32 0.0, %v619
      %v621 = vpop.f32.mrb[0].mxu0
      %622 = vdwg.mxu0
      %v623 = vld [vmem:[#allocation2] sm:$0xff]
      %v624 = vld [vmem:[#allocation2 + $0x8] sm:$0xff]
      %v625 = vld [vmem:[#allocation2 + $0x10] sm:$0xff]
      %v626 = vld [vmem:[#allocation2 + $0x18] sm:$0xff]
      %v627 = vld [vmem:[#allocation2 + $0x20] sm:$0xff]
      %v628 = vld [vmem:[#allocation2 + $0x28] sm:$0xff]
      %v629 = vld [vmem:[#allocation2 + $0x30] sm:$0xff]
      %v630 = vld [vmem:[#allocation2 + $0x38] sm:$0xff]
      %v631 = vld [vmem:[#allocation2 + $0x40] sm:$0xff]
      %v632 = vld [vmem:[#allocation2 + $0x48] sm:$0xff]
      %v633 = vld [vmem:[#allocation2 + $0x50] sm:$0xff]
      %v634 = vld [vmem:[#allocation2 + $0x58] sm:$0xff]
      %v635 = vld [vmem:[#allocation2 + $0x60] sm:$0xff]
      %v636 = vld [vmem:[#allocation2 + $0x68] sm:$0xff]
      %v637 = vld [vmem:[#allocation2 + $0x70] sm:$0xff]
      %v638 = vld [vmem:[#allocation2 + $0x78] sm:$0xff]
      %v639 = vpack.c.bf16 %v624, %v623
      %v640 = vpack.c.bf16 %v626, %v625
      %v641 = vpack.c.bf16 %v628, %v627
      %v642 = vpack.c.bf16 %v630, %v629
      %v643 = vpack.c.bf16 %v632, %v631
      %v644 = vpack.c.bf16 %v634, %v633
      %v645 = vpack.c.bf16 %v636, %v635
      %v646 = vpack.c.bf16 %v638, %v637
      %v647 = vld [vmem:[#allocation3] sm:$0xf]
      %v648 = vld [vmem:[#allocation3 + $0x4] sm:$0xf]
      %v649 = vld [vmem:[#allocation3 + $0x8] sm:$0xf]
      %v650 = vld [vmem:[#allocation3 + $0xc] sm:$0xf]
      %v651 = vld [vmem:[#allocation3 + $0x10] sm:$0xf]
      %v652 = vld [vmem:[#allocation3 + $0x14] sm:$0xf]
      %v653 = vld [vmem:[#allocation3 + $0x18] sm:$0xf]
      %v654 = vld [vmem:[#allocation3 + $0x1c] sm:$0xf]
      %v655 = vld [vmem:[#allocation3 + $0x20] sm:$0xf]
      %v656 = vld [vmem:[#allocation3 + $0x24] sm:$0xf]
      %v657 = vld [vmem:[#allocation3 + $0x28] sm:$0xf]
      %v658 = vld [vmem:[#allocation3 + $0x2c] sm:$0xf]
      %v659 = vld [vmem:[#allocation3 + $0x30] sm:$0xf]
      %v660 = vld [vmem:[#allocation3 + $0x34] sm:$0xf]
      %v661 = vld [vmem:[#allocation3 + $0x38] sm:$0xf]
      %v662 = vld [vmem:[#allocation3 + $0x3c] sm:$0xf]
      %v679 = vunpack.c.l.b16 %v647
      %v680 = vunpack.c.l.b16 %v648
      %v681 = vunpack.c.l.b16 %v649
      %v682 = vunpack.c.l.b16 %v650
      %v683 = vunpack.c.l.b16 %v651
      %v684 = vunpack.c.l.b16 %v652
      %v685 = vunpack.c.l.b16 %v653
      %v686 = vunpack.c.l.b16 %v654
      %v687 = vunpack.c.l.b16 %v655
      %v688 = vunpack.c.l.b16 %v656
      %v689 = vunpack.c.l.b16 %v657
      %v690 = vunpack.c.l.b16 %v658
      %v691 = vunpack.c.l.b16 %v659
      %v692 = vunpack.c.l.b16 %v660
      %v693 = vunpack.c.l.b16 %v661
      %v694 = vunpack.c.l.b16 %v662
      %v695 = vpack.c.b16 %v680, %v679
      %v696 = vpack.c.b16 %v682, %v681
      %v697 = vpack.c.b16 %v684, %v683
      %v698 = vpack.c.b16 %v686, %v685
      %v699 = vpack.c.b16 %v688, %v687
      %v700 = vpack.c.b16 %v690, %v689
      %v701 = vpack.c.b16 %v692, %v691
      %v702 = vpack.c.b16 %v694, %v693
      %711 = vmatprep.subr.bf16.mxu0 0
      %712 = vmatpush1.bf16.msra.mxu0 %v695
      %713 = vmatprep.subr.bf16.mxu0 0
      %714 = vmatpush1.bf16.msra.mxu0 %v696
      %715 = vmatprep.subr.bf16.mxu0 0
      %716 = vmatpush1.bf16.msra.mxu0 %v697
      %717 = vmatprep.subr.bf16.mxu0 0
      %718 = vmatpush1.bf16.msra.mxu0 %v698
      %719 = vmatprep.subr.bf16.mxu0 0
      %720 = vmatpush1.bf16.msra.mxu0 %v699
      %721 = vmatprep.subr.bf16.mxu0 0
      %722 = vmatpush1.bf16.msra.mxu0 %v700
      %723 = vmatprep.subr.bf16.mxu0 0
      %724 = vmatpush1.bf16.msra.mxu0 %v701
      %725 = vmatprep.subr.bf16.mxu0 0
      %726 = vmatpush1.bf16.msra.mxu0 %v702
      %727 = vmatprep.subr.bf16.mxu0 0
      %728 = vmatpush1.bf16.msra.mxu0 0
      %729 = vmatprep.subr.bf16.mxu0 0
      %730 = vmatpush1.bf16.msra.mxu0 0
      %731 = vmatprep.subr.bf16.mxu0 0
      %732 = vmatpush1.bf16.msra.mxu0 0
      %733 = vmatprep.subr.bf16.mxu0 0
      %734 = vmatpush1.bf16.msra.mxu0 0
      %735 = vmatprep.subr.bf16.mxu0 0
      %736 = vmatpush1.bf16.msra.mxu0 0
      %737 = vmatprep.subr.bf16.mxu0 0
      %738 = vmatpush1.bf16.msra.mxu0 0
      %739 = vmatprep.subr.bf16.mxu0 0
      %740 = vmatpush1.bf16.msra.mxu0 0
      %741 = vmatprep.subr.bf16.mxu0 0
      %742 = vmatpush1.bf16.msra.mxu0 0
      %743 = vmatprep.mubr.bf16.mxu0 0
      %744 = vmatmul.mubr.bf16.gmra.mrb[0].mxu0 %v639
      %v745 = vpop.f32.mrb[0].mxu0
      %v746 = vadd.f32 0.0, %v745
      %v747 = vpop.f32.mrb[0].mxu0
      %v748 = vpop.f32.mrb[0].mxu0
      %v749 = vadd.f32 0.0, %v748
      %v750 = vpop.f32.mrb[0].mxu0
      %751 = vmatprep.mubr.bf16.mxu0 0
      %752 = vmatmul.mubr.bf16.gmra.mrb[0].mxu0 %v640
      %v753 = vpop.f32.mrb[0].mxu0
      %v754 = vadd.f32 0.0, %v753
      %v755 = vpop.f32.mrb[0].mxu0
      %v756 = vpop.f32.mrb[0].mxu0
      %v757 = vadd.f32 0.0, %v756
      %v758 = vpop.f32.mrb[0].mxu0
      %759 = vmatprep.mubr.bf16.mxu0 0
      %760 = vmatmul.mubr.bf16.gmra.mrb[0].mxu0 %v641
      %v761 = vpop.f32.mrb[0].mxu0
      %v762 = vadd.f32 0.0, %v761
      %v763 = vpop.f32.mrb[0].mxu0
      %v764 = vpop.f32.mrb[0].mxu0
      %v765 = vadd.f32 0.0, %v764
      %v766 = vpop.f32.mrb[0].mxu0
      %767 = vmatprep.mubr.bf16.mxu0 0
      %768 = vmatmul.mubr.bf16.gmra.mrb[0].mxu0 %v642
      %v769 = vpop.f32.mrb[0].mxu0
      %v770 = vadd.f32 0.0, %v769
      %v771 = vpop.f32.mrb[0].mxu0
      %v772 = vpop.f32.mrb[0].mxu0
      %v773 = vadd.f32 0.0, %v772
      %v774 = vpop.f32.mrb[0].mxu0
      %775 = vmatprep.mubr.bf16.mxu0 0
      %776 = vmatmul.mubr.bf16.gmra.mrb[0].mxu0 %v643
      %v777 = vpop.f32.mrb[0].mxu0
      %v778 = vadd.f32 0.0, %v777
      %v779 = vpop.f32.mrb[0].mxu0
      %v780 = vpop.f32.mrb[0].mxu0
      %v781 = vadd.f32 0.0, %v780
      %v782 = vpop.f32.mrb[0].mxu0
      %783 = vmatprep.mubr.bf16.mxu0 0
      %784 = vmatmul.mubr.bf16.gmra.mrb[0].mxu0 %v644
      %v785 = vpop.f32.mrb[0].mxu0
      %v786 = vadd.f32 0.0, %v785
      %v787 = vpop.f32.mrb[0].mxu0
      %v788 = vpop.f32.mrb[0].mxu0
      %v789 = vadd.f32 0.0, %v788
      %v790 = vpop.f32.mrb[0].mxu0
      %791 = vmatprep.mubr.bf16.mxu0 0
      %792 = vmatmul.mubr.bf16.gmra.mrb[0].mxu0 %v645
      %v793 = vpop.f32.mrb[0].mxu0
      %v794 = vadd.f32 0.0, %v793
      %v795 = vpop.f32.mrb[0].mxu0
      %v796 = vpop.f32.mrb[0].mxu0
      %v797 = vadd.f32 0.0, %v796
      %v798 = vpop.f32.mrb[0].mxu0
      %799 = vmatprep.mubr.bf16.mxu0 0
      %800 = vmatmul.mubr.bf16.gmra.mrb[0].mxu0 %v646
      %v801 = vpop.f32.mrb[0].mxu0
      %v802 = vadd.f32 0.0, %v801
      %v803 = vpop.f32.mrb[0].mxu0
      %v804 = vpop.f32.mrb[0].mxu0
      %v805 = vadd.f32 0.0, %v804
      %v806 = vpop.f32.mrb[0].mxu0
      %807 = vdwg.mxu0
      %809 = vset.pattern.permute.xlu0 0
      %810 = vperm.xlu0 %809, %v365
      %v811 = vpop.permute.xlu0 %810
      %814 = vset.pattern.permute.xlu0 0
      %815 = vperm.xlu0 %814, %v366
      %v816 = vpop.permute.xlu0 %815
      %819 = vset.pattern.permute.xlu0 0
      %820 = vperm.xlu0 %819, %v367
      %v821 = vpop.permute.xlu0 %820
      %824 = vset.pattern.permute.xlu0 0
      %825 = vperm.xlu0 %824, %v368
      %v826 = vpop.permute.xlu0 %825
      %829 = vset.pattern.permute.xlu0 0
      %830 = vperm.xlu0 %829, %v369
      %v831 = vpop.permute.xlu0 %830
      %834 = vset.pattern.permute.xlu0 0
      %835 = vperm.xlu0 %834, %v370
      %v836 = vpop.permute.xlu0 %835
      %839 = vset.pattern.permute.xlu0 0
      %840 = vperm.xlu0 %839, %v371
      %v841 = vpop.permute.xlu0 %840
      %844 = vset.pattern.permute.xlu0 0
      %845 = vperm.xlu0 %844, %v372
      %v846 = vpop.permute.xlu0 %845
      %849 = vset.pattern.permute.xlu0 0
      %850 = vperm.xlu0 %849, %v373
      %v851 = vpop.permute.xlu0 %850
      %854 = vset.pattern.permute.xlu0 0
      %855 = vperm.xlu0 %854, %v374
      %v856 = vpop.permute.xlu0 %855
      %859 = vset.pattern.permute.xlu0 0
      %860 = vperm.xlu0 %859, %v375
      %v861 = vpop.permute.xlu0 %860
      %864 = vset.pattern.permute.xlu0 0
      %865 = vperm.xlu0 %864, %v376
      %v866 = vpop.permute.xlu0 %865
      %869 = vset.pattern.permute.xlu0 0
      %870 = vperm.xlu0 %869, %v377
      %v871 = vpop.permute.xlu0 %870
      %874 = vset.pattern.permute.xlu0 0
      %875 = vperm.xlu0 %874, %v378
      %v876 = vpop.permute.xlu0 %875
      %879 = vset.pattern.permute.xlu0 0
      %880 = vperm.xlu0 %879, %v379
      %v881 = vpop.permute.xlu0 %880
      %884 = vset.pattern.permute.xlu0 0
      %885 = vperm.xlu0 %884, %v380
      %v886 = vpop.permute.xlu0 %885
      %v888 = vmul.f32 %v811, %v746
      %v889 = vmul.f32 %v816, %v749
      %v890 = vmul.f32 %v821, %v754
      %v891 = vmul.f32 %v826, %v757
      %v892 = vmul.f32 %v831, %v762
      %v893 = vmul.f32 %v836, %v765
      %v894 = vmul.f32 %v841, %v770
      %v895 = vmul.f32 %v846, %v773
      %v896 = vmul.f32 %v851, %v778
      %v897 = vmul.f32 %v856, %v781
      %v898 = vmul.f32 %v861, %v786
      %v899 = vmul.f32 %v866, %v789
      %v900 = vmul.f32 %v871, %v794
      %v901 = vmul.f32 %v876, %v797
      %v902 = vmul.f32 %v881, %v802
      %v903 = vmul.f32 %v886, %v805
      %v904 = vsub.f32 %v561, %v888
      %v905 = vsub.f32 %v564, %v889
      %v906 = vsub.f32 %v569, %v890
      %v907 = vsub.f32 %v572, %v891
      %v908 = vsub.f32 %v577, %v892
      %v909 = vsub.f32 %v580, %v893
      %v910 = vsub.f32 %v585, %v894
      %v911 = vsub.f32 %v588, %v895
      %v912 = vsub.f32 %v593, %v896
      %v913 = vsub.f32 %v596, %v897
      %v914 = vsub.f32 %v601, %v898
      %v915 = vsub.f32 %v604, %v899
      %v916 = vsub.f32 %v609, %v900
      %v917 = vsub.f32 %v612, %v901
      %v918 = vsub.f32 %v617, %v902
      %v919 = vsub.f32 %v620, %v903
      %v920 = vld [vmem:[%s7] sm:$0x1]
      %v922 = vlaneseq
      %v923 = vshrl.u32 %v922, 7
      %v924 = vsub.s32 0, %v923
      %v925 = vrot.slane %v920, %v924
      %v927 = vadd.f32 %v904, %v925
      %v928 = vadd.f32 %v905, %v925
      %v929 = vadd.f32 %v906, %v925
      %v930 = vadd.f32 %v907, %v925
      %v931 = vadd.f32 %v908, %v925
      %v932 = vadd.f32 %v909, %v925
      %v933 = vadd.f32 %v910, %v925
      %v934 = vadd.f32 %v911, %v925
      %v935 = vadd.f32 %v912, %v925
      %v936 = vadd.f32 %v913, %v925
      %v937 = vadd.f32 %v914, %v925
      %v938 = vadd.f32 %v915, %v925
      %v939 = vadd.f32 %v916, %v925
      %v940 = vadd.f32 %v917, %v925
      %v941 = vadd.f32 %v918, %v925
      %v942 = vadd.f32 %v919, %v925
      %v943 = vmax.f32 %v927, 0.0
      %v944 = vmax.f32 %v928, 0.0
      %v945 = vmax.f32 %v929, 0.0
      %v946 = vmax.f32 %v930, 0.0
      %v947 = vmax.f32 %v931, 0.0
      %v948 = vmax.f32 %v932, 0.0
      %v949 = vmax.f32 %v933, 0.0
      %v950 = vmax.f32 %v934, 0.0
      %v951 = vmax.f32 %v935, 0.0
      %v952 = vmax.f32 %v936, 0.0
      %v953 = vmax.f32 %v937, 0.0
      %v954 = vmax.f32 %v938, 0.0
      %v955 = vmax.f32 %v939, 0.0
      %v956 = vmax.f32 %v940, 0.0
      %v957 = vmax.f32 %v941, 0.0
      %v958 = vmax.f32 %v942, 0.0
      %v959 = vpack.c.bf16 %v944, %v943
      %v960 = vpack.c.bf16 %v946, %v945
      %v961 = vpack.c.bf16 %v948, %v947
      %v962 = vpack.c.bf16 %v950, %v949
      %v963 = vpack.c.bf16 %v952, %v951
      %v964 = vpack.c.bf16 %v954, %v953
      %v965 = vpack.c.bf16 %v956, %v955
      %v966 = vpack.c.bf16 %v958, %v957
      %v967 = vld [vmem:[#allocation6] sm:$0xf]
      %v968 = vld [vmem:[#allocation6 + $0x4] sm:$0xf]
      %v969 = vld [vmem:[#allocation6 + $0x8] sm:$0xf]
      %v970 = vld [vmem:[#allocation6 + $0xc] sm:$0xf]
      %v971 = vld [vmem:[#allocation6 + $0x10] sm:$0xf]
      %v972 = vld [vmem:[#allocation6 + $0x14] sm:$0xf]
      %v973 = vld [vmem:[#allocation6 + $0x18] sm:$0xf]
      %v974 = vld [vmem:[#allocation6 + $0x1c] sm:$0xf]
      %v975 = vld [vmem:[#allocation6 + $0x20] sm:$0xf]
      %v976 = vld [vmem:[#allocation6 + $0x24] sm:$0xf]
      %v977 = vld [vmem:[#allocation6 + $0x28] sm:$0xf]
      %v978 = vld [vmem:[#allocation6 + $0x2c] sm:$0xf]
      %v979 = vld [vmem:[#allocation6 + $0x30] sm:$0xf]
      %v980 = vld [vmem:[#allocation6 + $0x34] sm:$0xf]
      %v981 = vld [vmem:[#allocation6 + $0x38] sm:$0xf]
      %v982 = vld [vmem:[#allocation6 + $0x3c] sm:$0xf]
      %v999 = vunpack.c.l.b16 %v967
      %v1000 = vunpack.c.l.b16 %v968
      %v1001 = vunpack.c.l.b16 %v969
      %v1002 = vunpack.c.l.b16 %v970
      %v1003 = vunpack.c.l.b16 %v971
      %v1004 = vunpack.c.l.b16 %v972
      %v1005 = vunpack.c.l.b16 %v973
      %v1006 = vunpack.c.l.b16 %v974
      %v1007 = vunpack.c.l.b16 %v975
      %v1008 = vunpack.c.l.b16 %v976
      %v1009 = vunpack.c.l.b16 %v977
      %v1010 = vunpack.c.l.b16 %v978
      %v1011 = vunpack.c.l.b16 %v979
      %v1012 = vunpack.c.l.b16 %v980
      %v1013 = vunpack.c.l.b16 %v981
      %v1014 = vunpack.c.l.b16 %v982
      %v1015 = vpack.c.b16 %v1000, %v999
      %v1016 = vpack.c.b16 %v1002, %v1001
      %v1017 = vpack.c.b16 %v1004, %v1003
      %v1018 = vpack.c.b16 %v1006, %v1005
      %v1019 = vpack.c.b16 %v1008, %v1007
      %v1020 = vpack.c.b16 %v1010, %v1009
      %v1021 = vpack.c.b16 %v1012, %v1011
      %v1022 = vpack.c.b16 %v1014, %v1013
      %1031 = vmatprep.subr.bf16.mxu0 0
      %1032 = vmatpush1.bf16.msra.mxu0 %v1015
      %1033 = vmatprep.subr.bf16.mxu0 0
      %1034 = vmatpush1.bf16.msra.mxu0 %v1016
      %1035 = vmatprep.subr.bf16.mxu0 0
      %1036 = vmatpush1.bf16.msra.mxu0 %v1017
      %1037 = vmatprep.subr.bf16.mxu0 0
      %1038 = vmatpush1.bf16.msra.mxu0 %v1018
      %1039 = vmatprep.subr.bf16.mxu0 0
      %1040 = vmatpush1.bf16.msra.mxu0 %v1019
      %1041 = vmatprep.subr.bf16.mxu0 0
      %1042 = vmatpush1.bf16.msra.mxu0 %v1020
      %1043 = vmatprep.subr.bf16.mxu0 0
      %1044 = vmatpush1.bf16.msra.mxu0 %v1021
      %1045 = vmatprep.subr.bf16.mxu0 0
      %1046 = vmatpush1.bf16.msra.mxu0 %v1022
      %1047 = vmatprep.subr.bf16.mxu0 0
      %1048 = vmatpush1.bf16.msra.mxu0 0
      %1049 = vmatprep.subr.bf16.mxu0 0
      %1050 = vmatpush1.bf16.msra.mxu0 0
      %1051 = vmatprep.subr.bf16.mxu0 0
      %1052 = vmatpush1.bf16.msra.mxu0 0
      %1053 = vmatprep.subr.bf16.mxu0 0
      %1054 = vmatpush1.bf16.msra.mxu0 0
      %1055 = vmatprep.subr.bf16.mxu0 0
      %1056 = vmatpush1.bf16.msra.mxu0 0
      %1057 = vmatprep.subr.bf16.mxu0 0
      %1058 = vmatpush1.bf16.msra.mxu0 0
      %1059 = vmatprep.subr.bf16.mxu0 0
      %1060 = vmatpush1.bf16.msra.mxu0 0
      %1061 = vmatprep.subr.bf16.mxu0 0
      %1062 = vmatpush1.bf16.msra.mxu0 0
      %1063 = vmatprep.mubr.bf16.mxu0 0
      %1064 = vmatmul.mubr.bf16.gmra.mrb[0].mxu0 %v959
      %v1065 = vpop.f32.mrb[0].mxu0
      %v1066 = vadd.f32 0.0, %v1065
      %v1067 = vpop.f32.mrb[0].mxu0
      %v1068 = vpop.f32.mrb[0].mxu0
      %v1069 = vadd.f32 0.0, %v1068
      %v1070 = vpop.f32.mrb[0].mxu0
      %1071 = vmatprep.mubr.bf16.mxu0 0
      %1072 = vmatmul.mubr.bf16.gmra.mrb[0].mxu0 %v960
      %v1073 = vpop.f32.mrb[0].mxu0
      %v1074 = vadd.f32 0.0, %v1073
      %v1075 = vpop.f32.mrb[0].mxu0
      %v1076 = vpop.f32.mrb[0].mxu0
      %v1077 = vadd.f32 0.0, %v1076
      %v1078 = vpop.f32.mrb[0].mxu0
      %1079 = vmatprep.mubr.bf16.mxu0 0
      %1080 = vmatmul.mubr.bf16.gmra.mrb[0].mxu0 %v961
      %v1081 = vpop.f32.mrb[0].mxu0
      %v1082 = vadd.f32 0.0, %v1081
      %v1083 = vpop.f32.mrb[0].mxu0
      %v1084 = vpop.f32.mrb[0].mxu0
      %v1085 = vadd.f32 0.0, %v1084
      %v1086 = vpop.f32.mrb[0].mxu0
      %1087 = vmatprep.mubr.bf16.mxu0 0
      %1088 = vmatmul.mubr.bf16.gmra.mrb[0].mxu0 %v962
      %v1089 = vpop.f32.mrb[0].mxu0
      %v1090 = vadd.f32 0.0, %v1089
      %v1091 = vpop.f32.mrb[0].mxu0
      %v1092 = vpop.f32.mrb[0].mxu0
      %v1093 = vadd.f32 0.0, %v1092
      %v1094 = vpop.f32.mrb[0].mxu0
      %1095 = vmatprep.mubr.bf16.mxu0 0
      %1096 = vmatmul.mubr.bf16.gmra.mrb[0].mxu0 %v963
      %v1097 = vpop.f32.mrb[0].mxu0
      %v1098 = vadd.f32 0.0, %v1097
      %v1099 = vpop.f32.mrb[0].mxu0
      %v1100 = vpop.f32.mrb[0].mxu0
      %v1101 = vadd.f32 0.0, %v1100
      %v1102 = vpop.f32.mrb[0].mxu0
      %1103 = vmatprep.mubr.bf16.mxu0 0
      %1104 = vmatmul.mubr.bf16.gmra.mrb[0].mxu0 %v964
      %v1105 = vpop.f32.mrb[0].mxu0
      %v1106 = vadd.f32 0.0, %v1105
      %v1107 = vpop.f32.mrb[0].mxu0
      %v1108 = vpop.f32.mrb[0].mxu0
      %v1109 = vadd.f32 0.0, %v1108
      %v1110 = vpop.f32.mrb[0].mxu0
      %1111 = vmatprep.mubr.bf16.mxu0 0
      %1112 = vmatmul.mubr.bf16.gmra.mrb[0].mxu0 %v965
      %v1113 = vpop.f32.mrb[0].mxu0
      %v1114 = vadd.f32 0.0, %v1113
      %v1115 = vpop.f32.mrb[0].mxu0
      %v1116 = vpop.f32.mrb[0].mxu0
      %v1117 = vadd.f32 0.0, %v1116
      %v1118 = vpop.f32.mrb[0].mxu0
      %1119 = vmatprep.mubr.bf16.mxu0 0
      %1120 = vmatmul.mubr.bf16.gmra.mrb[0].mxu0 %v966
      %v1121 = vpop.f32.mrb[0].mxu0
      %v1122 = vadd.f32 0.0, %v1121
      %v1123 = vpop.f32.mrb[0].mxu0
      %v1124 = vpop.f32.mrb[0].mxu0
      %v1125 = vadd.f32 0.0, %v1124
      %v1126 = vpop.f32.mrb[0].mxu0
      %1127 = vdwg.mxu0
      %1129 = vset.pattern.permute.xlu0 0
      %1130 = vperm.xlu0 %1129, %v382
      %v1131 = vpop.permute.xlu0 %1130
      %1134 = vset.pattern.permute.xlu0 0
      %1135 = vperm.xlu0 %1134, %v383
      %v1136 = vpop.permute.xlu0 %1135
      %1139 = vset.pattern.permute.xlu0 0
      %1140 = vperm.xlu0 %1139, %v384
      %v1141 = vpop.permute.xlu0 %1140
      %1144 = vset.pattern.permute.xlu0 0
      %1145 = vperm.xlu0 %1144, %v385
      %v1146 = vpop.permute.xlu0 %1145
      %1149 = vset.pattern.permute.xlu0 0
      %1150 = vperm.xlu0 %1149, %v386
      %v1151 = vpop.permute.xlu0 %1150
      %1154 = vset.pattern.permute.xlu0 0
      %1155 = vperm.xlu0 %1154, %v387
      %v1156 = vpop.permute.xlu0 %1155
      %1159 = vset.pattern.permute.xlu0 0
      %1160 = vperm.xlu0 %1159, %v388
      %v1161 = vpop.permute.xlu0 %1160
      %1164 = vset.pattern.permute.xlu0 0
      %1165 = vperm.xlu0 %1164, %v389
      %v1166 = vpop.permute.xlu0 %1165
      %1169 = vset.pattern.permute.xlu0 0
      %1170 = vperm.xlu0 %1169, %v390
      %v1171 = vpop.permute.xlu0 %1170
      %1174 = vset.pattern.permute.xlu0 0
      %1175 = vperm.xlu0 %1174, %v391
      %v1176 = vpop.permute.xlu0 %1175
      %1179 = vset.pattern.permute.xlu0 0
      %1180 = vperm.xlu0 %1179, %v392
      %v1181 = vpop.permute.xlu0 %1180
      %1184 = vset.pattern.permute.xlu0 0
      %1185 = vperm.xlu0 %1184, %v393
      %v1186 = vpop.permute.xlu0 %1185
      %1189 = vset.pattern.permute.xlu0 0
      %1190 = vperm.xlu0 %1189, %v394
      %v1191 = vpop.permute.xlu0 %1190
      %1194 = vset.pattern.permute.xlu0 0
      %1195 = vperm.xlu0 %1194, %v395
      %v1196 = vpop.permute.xlu0 %1195
      %1199 = vset.pattern.permute.xlu0 0
      %1200 = vperm.xlu0 %1199, %v396
      %v1201 = vpop.permute.xlu0 %1200
      %1204 = vset.pattern.permute.xlu0 0
      %1205 = vperm.xlu0 %1204, %v397
      %v1206 = vpop.permute.xlu0 %1205
      %v1208 = vmul.f32 %v1131, %v1066
      %v1209 = vmul.f32 %v1136, %v1069
      %v1210 = vmul.f32 %v1141, %v1074
      %v1211 = vmul.f32 %v1146, %v1077
      %v1212 = vmul.f32 %v1151, %v1082
      %v1213 = vmul.f32 %v1156, %v1085
      %v1214 = vmul.f32 %v1161, %v1090
      %v1215 = vmul.f32 %v1166, %v1093
      %v1216 = vmul.f32 %v1171, %v1098
      %v1217 = vmul.f32 %v1176, %v1101
      %v1218 = vmul.f32 %v1181, %v1106
      %v1219 = vmul.f32 %v1186, %v1109
      %v1220 = vmul.f32 %v1191, %v1114
      %v1221 = vmul.f32 %v1196, %v1117
      %v1222 = vmul.f32 %v1201, %v1122
      %v1223 = vmul.f32 %v1206, %v1125
      %v1224 = vpack.c.bf16 %v1209, %v1208
      %v1225 = vpack.c.bf16 %v1211, %v1210
      %v1226 = vpack.c.bf16 %v1213, %v1212
      %v1227 = vpack.c.bf16 %v1215, %v1214
      %v1228 = vpack.c.bf16 %v1217, %v1216
      %v1229 = vpack.c.bf16 %v1219, %v1218
      %v1230 = vpack.c.bf16 %v1221, %v1220
      %v1231 = vpack.c.bf16 %v1223, %v1222
      %v1240 = vunpack.c.l.b16 %v1224
      %v1241 = vunpack.c.h.b16 %v1224
      %v1242 = vunpack.c.l.b16 %v1225
      %v1243 = vunpack.c.h.b16 %v1225
      %v1244 = vunpack.c.l.b16 %v1226
      %v1245 = vunpack.c.h.b16 %v1226
      %v1246 = vunpack.c.l.b16 %v1227
      %v1247 = vunpack.c.h.b16 %v1227
      %v1248 = vunpack.c.l.b16 %v1228
      %v1249 = vunpack.c.h.b16 %v1228
      %v1250 = vunpack.c.l.b16 %v1229
      %v1251 = vunpack.c.h.b16 %v1229
      %v1252 = vunpack.c.l.b16 %v1230
      %v1253 = vunpack.c.h.b16 %v1230
      %v1254 = vunpack.c.l.b16 %v1231
      %v1255 = vunpack.c.h.b16 %v1231
      %v1256 = vpack.c.b16 %v1240, %v1240
      %v1257 = vpack.c.b16 %v1241, %v1241
      %v1258 = vpack.c.b16 %v1242, %v1242
      %v1259 = vpack.c.b16 %v1243, %v1243
      %v1260 = vpack.c.b16 %v1244, %v1244
      %v1261 = vpack.c.b16 %v1245, %v1245
      %v1262 = vpack.c.b16 %v1246, %v1246
      %v1263 = vpack.c.b16 %v1247, %v1247
      %v1264 = vpack.c.b16 %v1248, %v1248
      %v1265 = vpack.c.b16 %v1249, %v1249
      %v1266 = vpack.c.b16 %v1250, %v1250
      %v1267 = vpack.c.b16 %v1251, %v1251
      %v1268 = vpack.c.b16 %v1252, %v1252
      %v1269 = vpack.c.b16 %v1253, %v1253
      %v1270 = vpack.c.b16 %v1254, %v1254
      %v1271 = vpack.c.b16 %v1255, %v1255
      %1288 = vst [vmem:[#allocation8] sm:$0xf] %v1256
      %1289 = vst [vmem:[#allocation8 + $0x4] sm:$0xf] %v1257
      %1290 = vst [vmem:[#allocation8 + $0x8] sm:$0xf] %v1258
      %1291 = vst [vmem:[#allocation8 + $0xc] sm:$0xf] %v1259
      %1292 = vst [vmem:[#allocation8 + $0x10] sm:$0xf] %v1260
      %1293 = vst [vmem:[#allocation8 + $0x14] sm:$0xf] %v1261
      %1294 = vst [vmem:[#allocation8 + $0x18] sm:$0xf] %v1262
      %1295 = vst [vmem:[#allocation8 + $0x1c] sm:$0xf] %v1263
      %1296 = vst [vmem:[#allocation8 + $0x20] sm:$0xf] %v1264
      %1297 = vst [vmem:[#allocation8 + $0x24] sm:$0xf] %v1265
      %1298 = vst [vmem:[#allocation8 + $0x28] sm:$0xf] %v1266
      %1299 = vst [vmem:[#allocation8 + $0x2c] sm:$0xf] %v1267
      %1300 = vst [vmem:[#allocation8 + $0x30] sm:$0xf] %v1268
      %1301 = vst [vmem:[#allocation8 + $0x34] sm:$0xf] %v1269
      %1302 = vst [vmem:[#allocation8 + $0x38] sm:$0xf] %v1270
      %1303 = vst [vmem:[#allocation8 + $0x3c] sm:$0xf] %v1271
    $region53: #{tpu_custom_call.1} parent=1 // pred_fallthru
      _
    // Predicated region
    $region54: #{tpu_custom_call.1} parent=1 // pred_check
      _
    $region55: #{tpu_custom_call.1} parent=1 // pred_check_branch
      %1305 = sbr.rel (0) target = $region57
    $region56: #{tpu_custom_call.1} parent=1 // pred_region
      %s1307 = ssub.s32 1024, 1024
      %1308 = vsyncadd [#allocation5], %s1307
      %s1309 = sshll.u32 [#allocation8], 4
      %s1310 = int_to_ptr.vmem [resolvable:$true] %s1309
      %1315 = dma.vmem_to_hbm [thread:$0]  %s1310, 1024, %s9, [#allocation5], 64, 64, 4
    $region57: #{tpu_custom_call.1} parent=1 // pred_fallthru
      _
    // Predicated region
    $region58: #{tpu_custom_call.1} parent=1 // pred_check
      _
    $region59: #{tpu_custom_call.1} parent=1 // pred_check_branch
      %1317 = sbr.rel (0) target = $region61
    $region60: #{tpu_custom_call.1} parent=1 // pred_region
      %1318 = dma.done [#allocation5], 1024
    $region61: #{tpu_custom_call.1} parent=1 // pred_fallthru
      _
    %1319 = vsyncpa [#allocation4], 1
    %1320 = vsyncpa [#allocation7], 1
    %1321 = vsyncpa [#allocation5], 1

</llo_original>
